<compile_context>
chip_gen: v7x
topology: tpu7x:2x2x1
jax: 0.10.0
libtpu: 0.0.40
codegen_flags: <defaults>
</compile_context>

<pallas_src>
import jax
import jax.numpy as jnp
from jax.experimental import pallas as pl
from jax.experimental.pallas import tpu as pltpu


def _round_up(x, m):
    return (x + m - 1) // m * m


# --------------------------------------------------------------------------
# Path A: fused im2col + projection (one HBM read of x, one write of out).
# --------------------------------------------------------------------------
def _pick_bb(B, N, C, Hp, P, Wp, budget_bytes):
    """Images per grid step, sized by the *padded* VMEM footprint of a block."""
    # minor dims (Wp, P) are tiled to (round_up(Wp,8), round_up(P,128)) for f32.
    per_img = C * Hp * P * _round_up(Wp, 8) * _round_up(P, 128) * 4
    bb_cap = max(1, min(B, budget_bytes // max(per_img, 1)))
    if B >= 2:
        bb_cap = min(bb_cap, max(1, B // 2))  # keep >= 2 grid steps (2 TCs, v7x)
    for bb in range(bb_cap, 0, -1):
        if B % bb == 0 and (bb * N) % 8 == 0:
            return bb
    return B  # single block covering all rows (block dims == full array dims)


def _patch_embed_fused(x, weight, bias, P, out_dtype, *, block_budget=6 << 20):
    B, C, H, W = x.shape
    E = weight.shape[0]
    Hp, Wp = H // P, W // P
    N = Hp * Wp
    K = C * P * P
    M = B * N

    # Free reshape (row-major contiguous): NO extra HBM pass.
    x6 = x.reshape(B, C, Hp, P, Wp, P)
    w2d = weight.reshape(E, K).T.astype(jnp.bfloat16)   # (K, E), K order (c,ph,pw)
    b2d = bias.reshape(1, E).astype(jnp.float32)

    bb = _pick_bb(B, N, C, Hp, P, Wp, block_budget)
    rows_blk = bb * N
    grid = (B // bb,)

    def kernel(x_ref, w_ref, b_ref, o_ref):
        xb = x_ref[...]                               # (bb, C, Hp, P, Wp, P) f32
        xb = jnp.transpose(xb, (0, 2, 4, 1, 3, 5))    # (bb, Hp, Wp, C, P, P)
        rows = xb.reshape(rows_blk, K).astype(jnp.bfloat16)
        acc = jnp.dot(rows, w_ref[...], preferred_element_type=jnp.float32)
        o_ref[...] = (acc + b_ref[...]).astype(o_ref.dtype)

    out = pl.pallas_call(
        kernel,
        out_shape=jax.ShapeDtypeStruct((M, E), out_dtype),
        grid_spec=pltpu.PrefetchScalarGridSpec(
            num_scalar_prefetch=0,
            grid=grid,
            in_specs=[
                # raw (reshaped) image block; rearrangement happens in VMEM
                pl.BlockSpec((bb, C, Hp, P, Wp, P),
                             lambda i: (i, 0, 0, 0, 0, 0)),
                pl.BlockSpec((K, E), lambda i: (0, 0)),   # weight: resident
                pl.BlockSpec((1, E), lambda i: (0, 0)),   # bias:   resident
            ],
            out_specs=pl.BlockSpec((rows_blk, E), lambda i: (i, 0)),
        ),
        compiler_params=pltpu.CompilerParams(
            dimension_semantics=("parallel",),
            vmem_limit_bytes=48 * 1024 * 1024,
        ),
    )(x6, w2d, b2d)
    return out.reshape(B, N, E)   # bitcast (E never padded, rows contiguous)


# --------------------------------------------------------------------------
# Path B: two-pass fallback — XLA im2col (single fused pass) + GEMM kernel.
# --------------------------------------------------------------------------
def _gemm_kernel(x_ref, w_ref, b_ref, o_ref):
    # x_ref: (TM, Kp) bf16   w_ref: (Kp, E) bf16   b_ref: (1, E) f32
    acc = jnp.dot(x_ref[...], w_ref[...], preferred_element_type=jnp.float32)
    o_ref[...] = (acc + b_ref[...]).astype(o_ref.dtype)


def _pick_tm(M, tm_req):
    """Largest row tile <= tm_req that divides M (no padding pass) and keeps
    bf16 sublane alignment; fall back to full-M / padded tiling otherwise."""
    t = min(tm_req, M)
    for cand in range(t, 15, -1):
        if M % cand == 0 and cand % 16 == 0:
            return cand
    if M <= tm_req:
        return M                      # one block == full rows (always legal)
    return tm_req                     # no nice divisor: caller pads M


def _patch_embed_two_pass(x, weight, bias, P, out_dtype, *, tm_req=1024):
    B, C, H, W = x.shape
    E = weight.shape[0]
    Hp, Wp = H // P, W // P
    N = Hp * Wp
    K = C * P * P
    M = B * N

    # im2col in XLA (one fused transpose+downcast pass over x).
    xp = x.reshape(B, C, Hp, P, Wp, P)
    xp = jnp.transpose(xp, (0, 2, 4, 1, 3, 5)).reshape(M, K).astype(jnp.bfloat16)
    w2d = weight.reshape(E, K).T.astype(jnp.bfloat16)
    b2d = bias.reshape(1, E).astype(jnp.float32)

    # Zero-pad K to a lane multiple: full-width activation loads, full MXU
    # contraction depth (only triggers for tiny K; ViT K=768 is already aligned).
    Kp = _round_up(K, 128)
    if Kp != K:
        xp = jnp.pad(xp, ((0, 0), (0, Kp - K)))
        w2d = jnp.pad(w2d, ((0, Kp - K), (0, 0)))

    tm = _pick_tm(M, tm_req)
    Mp = _round_up(M, tm)
    if Mp != M:                       # only when no divisor tile exists
        xp = jnp.pad(xp, ((0, Mp - M), (0, 0)))

    out = pl.pallas_call(
        _gemm_kernel,
        out_shape=jax.ShapeDtypeStruct((Mp, E), out_dtype),
        grid_spec=pltpu.PrefetchScalarGridSpec(
            num_scalar_prefetch=0,
            grid=(Mp // tm,),                      # 1-D row grid; E in one tile
            in_specs=[
                pl.BlockSpec((tm, Kp), lambda i: (i, 0)),   # activations
                pl.BlockSpec((Kp, E), lambda i: (0, 0)),    # weight: resident
                pl.BlockSpec((1, E), lambda i: (0, 0)),     # bias:   resident
            ],
            out_specs=pl.BlockSpec((tm, E), lambda i: (i, 0)),
        ),
        compiler_params=pltpu.CompilerParams(
            dimension_semantics=("parallel",),
            vmem_limit_bytes=48 * 1024 * 1024,
        ),
    )(xp, w2d, b2d)

    if Mp != M:
        out = out[:M]
    return out.reshape(B, N, E)


# --------------------------------------------------------------------------
# Public wrapper (matches PatchEmbeddings.forward).
# --------------------------------------------------------------------------
def patch_embeddings(x, weight, bias, patch_size, *, out_dtype=None,
                     fuse_im2col=True, tm=1024):
    """
    x:      [B, C, H, W]  (NCHW, like PyTorch)
    weight: [E, C, P, P]  (PyTorch Conv2d weight layout)
    bias:   [E]
    returns [B, num_patches, E]
    out_dtype: pass jnp.bfloat16 to halve output writeback (default: x.dtype,
               matching the PyTorch module).
    """
    B, C, H, W = x.shape
    P = patch_size
    assert H % P == 0 and W % P == 0
    out_dtype = x.dtype if out_dtype is None else out_dtype

    if fuse_im2col:
        try:
            return _patch_embed_fused(x, weight, bias, P, out_dtype)
        except Exception:
            # Mosaic on this jax/libtpu version could not lower the in-kernel
            # patch rearrangement; fall back to the two-pass GEMM formulation.
            # (Eager call, so lowering errors surface here and are containable.)
            pass
    return _patch_embed_two_pass(x, weight, bias, P, out_dtype, tm_req=tm)


if __name__ == "__main__":
    # Module hyperparams (small, consistent with the forward):
    image_size, num_channels, patch_size, embed_size = 16, 4, 4, 32
    B = 2
    num_patches = (image_size // patch_size) ** 2        # 16

    key = jax.random.PRNGKey(0)
    kx, kw, kb = jax.random.split(key, 3)

    x = jax.random.normal(kx, (B, num_channels, image_size, image_size),
                          dtype=jnp.float32)
    # Deterministic synthetic parameters (Conv2d shapes from __init__).
    fan_in = num_channels * patch_size * patch_size
    bound = 1.0 / (fan_in ** 0.5)
    weight = jax.random.uniform(
        kw, (embed_size, num_channels, patch_size, patch_size),
        minval=-bound, maxval=bound, dtype=jnp.float32)
    bias = jax.random.uniform(kb, (embed_size,),
                              minval=-bound, maxval=bound, dtype=jnp.float32)

    out = jax.block_until_ready(patch_embeddings(x, weight, bias, patch_size))
    assert out.shape == (B, num_patches, embed_size), out.shape

    # Reference: strided conv via lax on bf16-rounded inputs (kernel computes in
    # bf16 with f32 accumulation), then flatten(2).transpose(1,2).
    xq = x.astype(jnp.bfloat16).astype(jnp.float32)
    wq = weight.astype(jnp.bfloat16).astype(jnp.float32)
    ref = jax.lax.conv_general_dilated(
        xq, wq, window_strides=(patch_size, patch_size), padding="VALID",
        dimension_numbers=("NCHW", "OIHW", "NCHW")) + bias[None, :, None, None]
    ref = jnp.transpose(ref.reshape(B, embed_size, num_patches), (0, 2, 1))
    err = float(jnp.abs(out.astype(jnp.float32) - ref).max())
    assert jnp.allclose(out.astype(jnp.float32), ref, atol=1e-2, rtol=1e-2), err

    print("KERNEL_OK")
</pallas_src>

<mosaic_0001>
module attributes {stable_mosaic.version = 11 : i64} {
  func.func @kernel(%arg0: i32, %arg1: memref<1x4x4x4x4x4xf32, #tpu.memory_space<vmem>>, %arg2: memref<64x32xbf16, #tpu.memory_space<vmem>>, %arg3: memref<1x32xf32, #tpu.memory_space<vmem>>, %arg4: memref<16x32xf32, #tpu.memory_space<vmem>>) attributes {dimension_semantics = [#tpu.dimension_semantics<parallel>], iteration_bounds = array<i64: 2>, scalar_prefetch = 0 : i64, scratch_operands = 0 : i64, tpu.core_type = #tpu.core_type<tc>, window_params = [{transform_indices = @transform_0, window_bounds = array<i64: 1, 4, 4, 4, 4, 4>}, {pipeline_mode = #tpu.pipeline_mode<synchronous>, transform_indices = @transform_1, window_bounds = array<i64: 64, 32>}, {pipeline_mode = #tpu.pipeline_mode<synchronous>, transform_indices = @transform_2, window_bounds = array<i64: 1, 32>}, {transform_indices = @transform_3, window_bounds = array<i64: 16, 32>}]} {
    %c0 = arith.constant 0 : index
    %c0_0 = arith.constant 0 : index
    %c0_1 = arith.constant 0 : index
    %c0_2 = arith.constant 0 : index
    %c0_3 = arith.constant 0 : index
    %c0_4 = arith.constant 0 : index
    %0 = vector.load %arg1[%c0, %c0_0, %c0_1, %c0_2, %c0_3, %c0_4] : memref<1x4x4x4x4x4xf32, #tpu.memory_space<vmem>>, vector<1x4x4x4x4x4xf32>
    %1 = tpu.transpose %0, [0, 2, 4, 1, 3, 5] : vector<1x4x4x4x4x4xf32> -> vector<1x4x4x4x4x4xf32>
    %2 = vector.shape_cast %1 : vector<1x4x4x4x4x4xf32> to vector<16x64xf32>
    %3 = arith.truncf %2 : vector<16x64xf32> to vector<16x64xbf16>
    %c0_5 = arith.constant 0 : index
    %c0_6 = arith.constant 0 : index
    %4 = vector.load %arg2[%c0_5, %c0_6] : memref<64x32xbf16, #tpu.memory_space<vmem>>, vector<64x32xbf16>
    %cst = arith.constant dense<0.000000e+00> : vector<16x32xf32>
    %5 = tpu.matmul %3, %4, %cst {dimension_numbers = #tpu.dot_dimension_numbers<[1], [0], [0], [1], [0, 0, 1, 1], [], []>} : vector<16x64xbf16>, vector<64x32xbf16>, vector<16x32xf32> -> vector<16x32xf32>
    %c0_7 = arith.constant 0 : index
    %c0_8 = arith.constant 0 : index
    %6 = vector.load %arg3[%c0_7, %c0_8] : memref<1x32xf32, #tpu.memory_space<vmem>>, vector<1x32xf32>
    %7 = vector.broadcast %6 : vector<1x32xf32> to vector<16x32xf32>
    %8 = arith.addf %5, %7 : vector<16x32xf32>
    %c0_9 = arith.constant 0 : index
    %c0_10 = arith.constant 0 : index
    %9 = vector.load %arg4[%c0_9, %c0_10] : memref<16x32xf32, #tpu.memory_space<vmem>>, vector<16x32xf32>
    tpu.vector_store %arg4[%c0_9, %c0_10], %8 {strides = array<i32>} : memref<16x32xf32, #tpu.memory_space<vmem>>, vector<16x32xf32>,
    return
  }
  func.func @transform_0(%arg0: i32) -> (i32, i32, i32, i32, i32, i32) {
    %c0_i32 = arith.constant 0 : i32
    %c0_i32_0 = arith.constant 0 : i32
    %c0_i32_1 = arith.constant 0 : i32
    %c0_i32_2 = arith.constant 0 : i32
    %c0_i32_3 = arith.constant 0 : i32
    %c0_i32_4 = arith.constant 0 : i32
    return %arg0, %c0_i32, %c0_i32_0, %c0_i32_1, %c0_i32_2, %c0_i32_3 : i32, i32, i32, i32, i32, i32
  }
  func.func @transform_1(%arg0: i32) -> (i32, i32) {
    %c0_i32 = arith.constant 0 : i32
    %c0_i32_0 = arith.constant 0 : i32
    %c0_i32_1 = arith.constant 0 : i32
    return %c0_i32, %c0_i32_0 : i32, i32
  }
  func.func @transform_2(%arg0: i32) -> (i32, i32) {
    %c0_i32 = arith.constant 0 : i32
    %c0_i32_0 = arith.constant 0 : i32
    %c0_i32_1 = arith.constant 0 : i32
    return %c0_i32, %c0_i32_0 : i32, i32
  }
  func.func @transform_3(%arg0: i32) -> (i32, i32) {
    %c0_i32 = arith.constant 0 : i32
    %c0_i32_0 = arith.constant 0 : i32
    return %arg0, %c0_i32 : i32, i32
  }
}

module attributes {stable_mosaic.version = 11 : i64} {
  func.func @_gemm_kernel(%arg0: i32, %arg1: memref<32x128xbf16, #tpu.memory_space<vmem>>, %arg2: memref<128x32xbf16, #tpu.memory_space<vmem>>, %arg3: memref<1x32xf32, #tpu.memory_space<vmem>>, %arg4: memref<32x32xf32, #tpu.memory_space<vmem>>) attributes {dimension_semantics = [#tpu.dimension_semantics<parallel>], iteration_bounds = array<i64: 1>, scalar_prefetch = 0 : i64, scratch_operands = 0 : i64, tpu.core_type = #tpu.core_type<tc>, window_params = [{transform_indices = @transform_0, window_bounds = array<i64: 32, 128>}, {pipeline_mode = #tpu.pipeline_mode<synchronous>, transform_indices = @transform_1, window_bounds = array<i64: 128, 32>}, {pipeline_mode = #tpu.pipeline_mode<synchronous>, transform_indices = @transform_2, window_bounds = array<i64: 1, 32>}, {transform_indices = @transform_3, window_bounds = array<i64: 32, 32>}]} {
    %c0 = arith.constant 0 : index
    %c0_0 = arith.constant 0 : index
    %0 = vector.load %arg1[%c0, %c0_0] : memref<32x128xbf16, #tpu.memory_space<vmem>>, vector<32x128xbf16>
    %c0_1 = arith.constant 0 : index
    %c0_2 = arith.constant 0 : index
    %1 = vector.load %arg2[%c0_1, %c0_2] : memref<128x32xbf16, #tpu.memory_space<vmem>>, vector<128x32xbf16>
    %cst = arith.constant dense<0.000000e+00> : vector<32x32xf32>
    %2 = tpu.matmul %0, %1, %cst {dimension_numbers = #tpu.dot_dimension_numbers<[1], [0], [0], [1], [0, 0, 1, 1], [], []>} : vector<32x128xbf16>, vector<128x32xbf16>, vector<32x32xf32> -> vector<32x32xf32>
    %c0_3 = arith.constant 0 : index
    %c0_4 = arith.constant 0 : index
    %3 = vector.load %arg3[%c0_3, %c0_4] : memref<1x32xf32, #tpu.memory_space<vmem>>, vector<1x32xf32>
    %4 = vector.broadcast %3 : vector<1x32xf32> to vector<32x32xf32>
    %5 = arith.addf %2, %4 : vector<32x32xf32>
    %c0_5 = arith.constant 0 : index
    %c0_6 = arith.constant 0 : index
    %6 = vector.load %arg4[%c0_5, %c0_6] : memref<32x32xf32, #tpu.memory_space<vmem>>, vector<32x32xf32>
    tpu.vector_store %arg4[%c0_5, %c0_6], %5 {strides = array<i32>} : memref<32x32xf32, #tpu.memory_space<vmem>>, vector<32x32xf32>,
    return
  }
  func.func @transform_0(%arg0: i32) -> (i32, i32) {
    %c0_i32 = arith.constant 0 : i32
    %c0_i32_0 = arith.constant 0 : i32
    return %arg0, %c0_i32 : i32, i32
  }
  func.func @transform_1(%arg0: i32) -> (i32, i32) {
    %c0_i32 = arith.constant 0 : i32
    %c0_i32_0 = arith.constant 0 : i32
    %c0_i32_1 = arith.constant 0 : i32
    return %c0_i32, %c0_i32_0 : i32, i32
  }
  func.func @transform_2(%arg0: i32) -> (i32, i32) {
    %c0_i32 = arith.constant 0 : i32
    %c0_i32_0 = arith.constant 0 : i32
    %c0_i32_1 = arith.constant 0 : i32
    return %c0_i32, %c0_i32_0 : i32, i32
  }
  func.func @transform_3(%arg0: i32) -> (i32, i32) {
    %c0_i32 = arith.constant 0 : i32
    %c0_i32_0 = arith.constant 0 : i32
    return %arg0, %c0_i32 : i32, i32
  }
}

</mosaic_0001>

<llo_original>
// kernel: tpu_custom_call.1
$region0: #{tpu_custom_call.1}
  #allocation0 [shape = 'u32[]', space=smem, size = 0x4, offset = 0x4, fixed_abs, tag = 'smem constant byte address 0x4 - core index']
  #allocation1 [shape = 'u32[144,128]{1,0:T(1,128)}', space=vmem, size = 0x12000, scoped, tag = 'internal scratch']
  %s0 = inlined_call_operand.vmem [shape: bf16[32,128], index: 0, kind: input, shape index: {}]
  %s1 = inlined_call_operand.vmem [shape: bf16[128,32], index: 1, kind: input, shape index: {}]
  %s2 = inlined_call_operand.vmem [shape: f32[1,32], index: 2, kind: input, shape index: {}]
  %s3 = inlined_call_operand.hbm [shape: f32[32,32], index: 3, kind: output, shape index: {}]
  %s4 = sld [smem:[#allocation0]]
  $region22: #{tpu_custom_call.1} parent=0
    _
  %s6 = ssub.s32 1, %s4
  %s7 = scalar_select 0, %s6, %s4
  $region1: #{tpu_custom_call.1} parent=0
    #allocation2 [shape = 'u8[16384]{0}', space=vmem, size = 0x4000, scoped, tag = 'output window, operand 0, single buffered']
    #allocation3 [shape = 's32[1]{0}', space=sflag, size = 0x4, scoped, tag = 'scoped memory for tpu_custom_call.1']
    %8 = vsyncpa [#allocation3], 0
    // Predicated region
    $region2: #{tpu_custom_call.1} parent=1 // pred_check
      _
    $region3: #{tpu_custom_call.1} parent=1 // pred_check_branch
      %10 = sbr.rel (0) target = $region5
    $region4: #{tpu_custom_call.1} parent=1 // pred_region
      _
    $region5: #{tpu_custom_call.1} parent=1 // pred_fallthru
      _
    // Predicated region
    $region6: #{tpu_custom_call.1} parent=1 // pred_check
      _
    $region7: #{tpu_custom_call.1} parent=1 // pred_check_branch
      %12 = sbr.rel (0) target = $region9
    $region8: #{tpu_custom_call.1} parent=1 // pred_region
      _
    $region9: #{tpu_custom_call.1} parent=1 // pred_fallthru
      _
    // Predicated region
    $region10: #{tpu_custom_call.1} parent=1 // pred_check
      _
    $region11: #{tpu_custom_call.1} parent=1 // pred_check_branch
      %14 = sbr.rel (0) target = $region13
    $region12: #{tpu_custom_call.1} parent=1 // pred_region
      _
    $region13: #{tpu_custom_call.1} parent=1 // pred_fallthru
      _
    %v16 = vld [vmem:[%s0] sm:$0xf]
    %v17 = vld [vmem:[%s0 + $0x4] sm:$0xf]
    %v18 = vld [vmem:[%s0 + $0x8] sm:$0xf]
    %v19 = vld [vmem:[%s0 + $0xc] sm:$0xf]
    %v20 = vld [vmem:[%s1] sm:$0xf]
    %v21 = vld [vmem:[%s1 + $0x4] sm:$0xf]
    %v22 = vld [vmem:[%s1 + $0x8] sm:$0xf]
    %v23 = vld [vmem:[%s1 + $0xc] sm:$0xf]
    %v24 = vld [vmem:[%s1 + $0x10] sm:$0xf]
    %v25 = vld [vmem:[%s1 + $0x14] sm:$0xf]
    %v26 = vld [vmem:[%s1 + $0x18] sm:$0xf]
    %v27 = vld [vmem:[%s1 + $0x1c] sm:$0xf]
    %v28 = vld [vmem:[%s1 + $0x20] sm:$0xf]
    %v29 = vld [vmem:[%s1 + $0x24] sm:$0xf]
    %v30 = vld [vmem:[%s1 + $0x28] sm:$0xf]
    %v31 = vld [vmem:[%s1 + $0x2c] sm:$0xf]
    %v32 = vld [vmem:[%s1 + $0x30] sm:$0xf]
    %v33 = vld [vmem:[%s1 + $0x34] sm:$0xf]
    %v34 = vld [vmem:[%s1 + $0x38] sm:$0xf]
    %v35 = vld [vmem:[%s1 + $0x3c] sm:$0xf]
    %v36 = vld [vmem:[%s2] sm:$0x1]
    %v38 = vlaneseq
    %v39 = vshrl.u32 %v38, 7
    %v40 = vsub.s32 0, %v39
    %v41 = vrot.slane %v36, %v40
    %v47 = vunpack.c.l.b16 %v16
    %v48 = vunpack.c.l.b16 %v17
    %v49 = vunpack.c.l.b16 %v18
    %v50 = vunpack.c.l.b16 %v19
    %v51 = vpack.c.b16 %v48, %v47
    %v52 = vpack.c.b16 %v50, %v49
    %v71 = vunpack.c.l.b16 %v20
    %v72 = vunpack.c.l.b16 %v21
    %v73 = vunpack.c.l.b16 %v22
    %v74 = vunpack.c.l.b16 %v23
    %v75 = vunpack.c.l.b16 %v24
    %v76 = vunpack.c.l.b16 %v25
    %v77 = vunpack.c.l.b16 %v26
    %v78 = vunpack.c.l.b16 %v27
    %v79 = vunpack.c.l.b16 %v28
    %v80 = vunpack.c.l.b16 %v29
    %v81 = vunpack.c.l.b16 %v30
    %v82 = vunpack.c.l.b16 %v31
    %v83 = vunpack.c.l.b16 %v32
    %v84 = vunpack.c.l.b16 %v33
    %v85 = vunpack.c.l.b16 %v34
    %v86 = vunpack.c.l.b16 %v35
    %v87 = vpack.c.b16 %v72, %v71
    %v88 = vpack.c.b16 %v74, %v73
    %v89 = vpack.c.b16 %v76, %v75
    %v90 = vpack.c.b16 %v78, %v77
    %v91 = vpack.c.b16 %v80, %v79
    %v92 = vpack.c.b16 %v82, %v81
    %v93 = vpack.c.b16 %v84, %v83
    %v94 = vpack.c.b16 %v86, %v85
    %103 = vmatprep.subr.bf16.mxu0 0
    %104 = vmatpush1.bf16.msra.mxu0 %v87
    %105 = vmatprep.subr.bf16.mxu0 0
    %106 = vmatpush1.bf16.msra.mxu0 %v88
    %107 = vmatprep.subr.bf16.mxu0 0
    %108 = vmatpush1.bf16.msra.mxu0 %v89
    %109 = vmatprep.subr.bf16.mxu0 0
    %110 = vmatpush1.bf16.msra.mxu0 %v90
    %111 = vmatprep.subr.bf16.mxu0 0
    %112 = vmatpush1.bf16.msra.mxu0 %v91
    %113 = vmatprep.subr.bf16.mxu0 0
    %114 = vmatpush1.bf16.msra.mxu0 %v92
    %115 = vmatprep.subr.bf16.mxu0 0
    %116 = vmatpush1.bf16.msra.mxu0 %v93
    %117 = vmatprep.subr.bf16.mxu0 0
    %118 = vmatpush1.bf16.msra.mxu0 %v94
    %119 = vmatprep.subr.bf16.mxu0 0
    %120 = vmatpush1.bf16.msra.mxu0 0
    %121 = vmatprep.subr.bf16.mxu0 0
    %122 = vmatpush1.bf16.msra.mxu0 0
    %123 = vmatprep.subr.bf16.mxu0 0
    %124 = vmatpush1.bf16.msra.mxu0 0
    %125 = vmatprep.subr.bf16.mxu0 0
    %126 = vmatpush1.bf16.msra.mxu0 0
    %127 = vmatprep.subr.bf16.mxu0 0
    %128 = vmatpush1.bf16.msra.mxu0 0
    %129 = vmatprep.subr.bf16.mxu0 0
    %130 = vmatpush1.bf16.msra.mxu0 0
    %131 = vmatprep.subr.bf16.mxu0 0
    %132 = vmatpush1.bf16.msra.mxu0 0
    %133 = vmatprep.subr.bf16.mxu0 0
    %134 = vmatpush1.bf16.msra.mxu0 0
    %135 = vmatprep.mubr.bf16.mxu0 0
    %136 = vmatmul.mubr.bf16.gmra.mrb[0].mxu0 %v51
    %v137 = vpop.f32.mrb[0].mxu0
    %v138 = vadd.f32 %v41, %v137
    %v139 = vpop.f32.mrb[0].mxu0
    %v140 = vpop.f32.mrb[0].mxu0
    %v141 = vadd.f32 %v41, %v140
    %v142 = vpop.f32.mrb[0].mxu0
    %143 = vmatprep.mubr.bf16.mxu0 0
    %144 = vmatmul.mubr.bf16.gmra.mrb[0].mxu0 %v52
    %v145 = vpop.f32.mrb[0].mxu0
    %v146 = vadd.f32 %v41, %v145
    %v147 = vpop.f32.mrb[0].mxu0
    %v148 = vpop.f32.mrb[0].mxu0
    %v149 = vadd.f32 %v41, %v148
    %v150 = vpop.f32.mrb[0].mxu0
    %151 = vdwg.mxu0
    %vm152 = vcmask 261120
    %153 = vst.msk [vmem:[#allocation2] sm:$0xff] %vm152, %v138
    %154 = vst.msk [vmem:[#allocation2 + $0x8] sm:$0xff] %vm152, %v141
    %155 = vst.msk [vmem:[#allocation2 + $0x10] sm:$0xff] %vm152, %v146
    %156 = vst.msk [vmem:[#allocation2 + $0x18] sm:$0xff] %vm152, %v149
    // Predicated region
    $region14: #{tpu_custom_call.1} parent=1 // pred_check
      _
    $region15: #{tpu_custom_call.1} parent=1 // pred_check_branch
      %158 = sbr.rel (0) target = $region17
    $region16: #{tpu_custom_call.1} parent=1 // pred_region
      %s160 = ssub.s32 512, 512
      %161 = vsyncadd [#allocation3], %s160
      %s162 = sshll.u32 [#allocation2], 4
      %s163 = int_to_ptr.vmem [resolvable:$true] %s162
      %168 = dma.vmem_to_hbm [thread:$0]  %s163, 512, %s3, [#allocation3], 128, 128, 8
    $region17: #{tpu_custom_call.1} parent=1 // pred_fallthru
      _
    // Predicated region
    $region18: #{tpu_custom_call.1} parent=1 // pred_check
      _
    $region19: #{tpu_custom_call.1} parent=1 // pred_check_branch
      %170 = sbr.rel (0) target = $region21
    $region20: #{tpu_custom_call.1} parent=1 // pred_region
      %171 = dma.done [#allocation3], 512
    $region21: #{tpu_custom_call.1} parent=1 // pred_fallthru
      _
    %172 = vsyncpa [#allocation3], 1

</llo_original>
